<compile_context>
chip_gen: v7x
topology: tpu7x:2x2x1
jax: 0.10.0
libtpu: 0.0.40
codegen_flags: <defaults>
</compile_context>

<pallas_src>
import functools

import numpy as np
import jax
import jax.numpy as jnp
from jax.experimental import pallas as pl
from jax.experimental.pallas import tpu as pltpu

BN_EPS = 1e-5


# ---------------------------------------------------------------------------
# Host-side layout plumbing & parameter folding
# ---------------------------------------------------------------------------
def _interp_matrix_align_corners(n_out, n_in):
    """(n_out, n_in) bilinear interpolation matrix, align_corners=True."""
    A = np.zeros((n_out, n_in), np.float32)
    if n_out == 1 or n_in == 1:
        A[:, 0] = 1.0
        return A
    scale = (n_in - 1) / (n_out - 1)
    for o in range(n_out):
        src = o * scale
        i0 = min(int(np.floor(src)), n_in - 1)
        i1 = min(i0 + 1, n_in - 1)
        f = src - i0
        A[o, i0] += 1.0 - f
        A[o, i1] += f
    return A


def _build_up_pad_matrix_np(Hi, Wi, H2, W2):
    """U^T of shape (Hi*Wi, H2*W2): x_flat @ U^T = bilinear 2x upsample
    (align_corners=True) followed by F.pad to (H2, W2)."""
    Hup, Wup = 2 * Hi, 2 * Wi
    Ah = _interp_matrix_align_corners(Hup, Hi)
    Aw = _interp_matrix_align_corners(Wup, Wi)
    dY, dX = H2 - Hup, W2 - Wup
    py0, px0 = dY // 2, dX // 2
    U = np.zeros((H2 * W2, Hi * Wi), np.float32)
    for ho in range(Hup):
        r = ho + py0
        if r < 0 or r >= H2:
            continue
        for wo in range(Wup):
            c = wo + px0
            if c < 0 or c >= W2:
                continue
            U[r * W2 + c, :] = np.kron(Ah[ho], Aw[wo])
    return U.T  # (Hi*Wi, H2*W2)


def build_up_pad_matrix_blockdiag(Hi, Wi, H2, W2, Bb):
    """Block-diagonal upsample+pad matrix for Bb batch images folded onto the
    lane axis: (Bb*Hi*Wi, Bb*H2*W2)."""
    ut = _build_up_pad_matrix_np(Hi, Wi, H2, W2)
    hiwi, hw = ut.shape
    UTb = np.zeros((Bb * hiwi, Bb * hw), np.float32)
    for b in range(Bb):
        UTb[b * hiwi:(b + 1) * hiwi, b * hw:(b + 1) * hw] = ut
    return jnp.asarray(UTb)


def build_tap_masks(H, W, Bb):
    """(9, Bb*H*W) f32 validity masks for the 9 zero-padded 3x3 taps, derived
    from (lane % HW) so roll wraparound across image boundaries is masked."""
    HW = H * W
    hh = np.arange(HW) // W
    ww = np.arange(HW) % W
    masks = np.zeros((9, HW), np.float32)
    t = 0
    for dy in (-1, 0, 1):
        for dx in (-1, 0, 1):
            valid = ((hh + dy >= 0) & (hh + dy < H) &
                     (ww + dx >= 0) & (ww + dx < W))
            masks[t] = valid.astype(np.float32)
            t += 1
    return jnp.asarray(np.tile(masks, (1, Bb)))


def fold_dwconv_bn(p):
    """Fold depthwise3x3 + pointwise1x1 + BatchNorm(eval) into one
    (Cout, 9*Cin) matrix (columns tap-major: t*Cin + ci) and a (Cout, 1) bias,
    matching the in-kernel im2col layout."""
    dw_w, dw_b, pw_w, pw_b = p["dw_w"], p["dw_b"], p["pw_w"], p["pw_b"]
    C, Co = dw_w.shape[0], pw_w.shape[0]
    scale = p["gamma"] / jnp.sqrt(p["var"] + BN_EPS)
    bn_b = p["beta"] - p["mean"] * scale
    dw = dw_w[:, 0, :, :].reshape(C, 9)              # tap t = ky*3 + kx
    pw = pw_w[:, :, 0, 0]                            # (Co, C)
    Wf = (scale[:, None, None] * pw[:, None, :]) * jnp.transpose(dw)[None, :, :]
    Wf = Wf.reshape(Co, 9 * C)                       # column = t*C + ci
    bf = scale * (pw @ dw_b + pw_b) + bn_b
    return Wf.astype(jnp.float32), bf.reshape(Co, 1).astype(jnp.float32)


def fold_conv1x1_bn(p):
    """Fold 1x1 conv + BatchNorm(eval) into (Cout, Cin) matrix + (Cout,1) bias."""
    scale = p["gamma"] / jnp.sqrt(p["var"] + BN_EPS)
    bn_b = p["beta"] - p["mean"] * scale
    Wf = scale[:, None] * p["w"][:, :, 0, 0]
    bf = scale * p["b"] + bn_b
    return Wf.astype(jnp.float32), bf.reshape(-1, 1).astype(jnp.float32)


def build_merged_c1_res(params, ccat, cout):
    """Stack the folded residual 1x1 conv under the folded c1 block so both are
    computed by ONE matmul against the im2col columns (residual columns land on
    the center tap block t=4, whose rows are exactly xcat)."""
    Wc1, bc1 = fold_dwconv_bn(params["c1"])          # (Cout, 9*Ccat), (Cout,1)
    Wre, bre = fold_conv1x1_bn(params["c"])          # (Cout, Ccat),   (Cout,1)
    Wre_full = jnp.zeros((cout, 9 * ccat), jnp.float32)
    Wre_full = Wre_full.at[:, 4 * ccat:5 * ccat].set(Wre)
    W1 = jnp.concatenate([Wc1, Wre_full], axis=0)    # (2*Cout, 9*Ccat)
    b1 = jnp.concatenate([bc1, bre], axis=0)         # (2*Cout, 1)
    return W1, b1


def _fold_batch_lanes(x, Bb):
    """(N, C, H, W) -> (N//Bb, C, Bb*H*W): batch onto the lane axis."""
    N, C, H, W = x.shape
    G = N // Bb
    return x.reshape(G, Bb, C, H * W).transpose(0, 2, 1, 3).reshape(G, C, Bb * H * W)


def _unfold_batch_lanes(y, Bb, H, W):
    """(N//Bb, C, Bb*H*W) -> (N, C, H, W)."""
    G, C, _ = y.shape
    return y.reshape(G, C, Bb, H, W).transpose(0, 2, 1, 3, 4).reshape(G * Bb, C, H, W)


# ---------------------------------------------------------------------------
# Pallas kernel
# ---------------------------------------------------------------------------
def _im2col_3x3(x, masks, W, lanes):
    """x: (C, lanes) f32 (lanes = Bb*H*W). Returns (9*C, lanes): the 9
    zero-padded 3x3 taps (tap-major rows), built with XLU lane rotations
    (pltpu.roll) + precomputed validity masks (VPU multiplies)."""
    taps = []
    t = 0
    for dy in (-1, 0, 1):
        for dx in (-1, 0, 1):
            s = dy * W + dx
            if s == 0:
                taps.append(x)
            else:
                rolled = pltpu.roll(x, shift=(-s) % lanes, axis=1)
                taps.append(rolled * masks[t:t + 1, :])
            t += 1
    return jnp.concatenate(taps, axis=0)


def dwres_up_kernel(x1_ref, x2_ref, ut_ref, mask_ref, w1_ref, b1_ref,
                    w2_ref, b2_ref, o_ref, *, W, cout):
    # x1_ref : (1, C1, Bb*Hi*Wi)  coarse input, batch folded onto lanes
    # x2_ref : (1, C2, lanes)     skip connection, lanes = Bb*H*W
    # ut_ref : (Bb*Hi*Wi, lanes)  block-diag upsample+pad matrix, bf16
    # mask   : (9, lanes)         per-tap validity masks, f32
    # w1/b1  : merged [c1 ; residual-1x1] folded block -> (2*Cout, 9*Ccat), (2*Cout,1)
    # w2/b2  : folded c2 block (dw3x3 + pw1x1 + BN)    -> (Cout, 9*Cout),  (Cout,1)
    # o_ref  : (1, Cout, lanes)   lane-dense output
    lanes = o_ref.shape[-1]
    x1 = x1_ref[0]                                    # (C1, Bb*HiWi) f32
    x2 = x2_ref[0]                                    # (C2, lanes)   f32
    masks = mask_ref[...]                             # (9, lanes)    f32

    # Bilinear 2x upsample (align_corners=True) + F.pad as one bf16 matmul.
    up = jnp.dot(x1.astype(jnp.bfloat16), ut_ref[...],
                 preferred_element_type=jnp.float32)  # (C1, lanes) f32
    # torch.cat([x2, x1_up], dim=1): x2 channels first.
    xcat = jnp.concatenate([x2, up], axis=0)          # (Ccat, lanes) f32

    # c1 (dw3x3 + pw1x1 + BN) AND residual 1x1 + BN in ONE im2col matmul.
    cols1 = _im2col_3x3(xcat, masks, W, lanes)        # (9*Ccat, lanes)
    y = jnp.dot(w1_ref[...], cols1.astype(jnp.bfloat16),
                preferred_element_type=jnp.float32) + b1_ref[...]   # (2*Cout, lanes)
    y1 = jnp.maximum(y[:cout], 0.0)                   # c1 path + ReLU
    re = y[cout:]                                     # residual path

    # c2: depthwise3x3 + pointwise1x1 + BN as ONE im2col matmul.
    cols2 = _im2col_3x3(y1, masks, W, lanes)          # (9*Cout, lanes)
    y2 = jnp.dot(w2_ref[...], cols2.astype(jnp.bfloat16),
                 preferred_element_type=jnp.float32) + b2_ref[...]

    # Residual add + final ReLU; lane-dense store.
    o_ref[0] = jnp.maximum(y2 + re, 0.0).astype(o_ref.dtype)


def dwres_up_pallas(x1, x2, params, batch_block=None):
    """DWRes_Up forward. x1: (N, C1, Hi, Wi), x2: (N, C2, H2, W2) NCHW."""
    N, C1, Hi, Wi = x1.shape
    N2, C2, H2, W2 = x2.shape
    assert N == N2
    Bb = N if batch_block is None else batch_block
    assert N % Bb == 0
    G = N // Bb
    HW = H2 * W2
    lanes = Bb * HW
    Ccat = C1 + C2
    Cout = params["c1"]["pw_w"].shape[0]

    UTb = build_up_pad_matrix_blockdiag(Hi, Wi, H2, W2, Bb).astype(jnp.bfloat16)
    MASK = build_tap_masks(H2, W2, Bb)                        # (9, lanes) f32
    W1, b1 = build_merged_c1_res(params, Ccat, Cout)          # merged c1 + residual
    W2f, b2 = fold_dwconv_bn(params["c2"])
    W1 = W1.astype(jnp.bfloat16)
    W2f = W2f.astype(jnp.bfloat16)

    # Layout plumbing only: fold batch + spatial onto the lane axis.
    x1f = _fold_batch_lanes(x1.astype(jnp.float32), Bb)       # (G, C1, Bb*HiWi)
    x2f = _fold_batch_lanes(x2.astype(jnp.float32), Bb)       # (G, C2, lanes)

    kernel = functools.partial(dwres_up_kernel, W=W2, cout=Cout)
    out = pl.pallas_call(
        kernel,
        out_shape=jax.ShapeDtypeStruct((G, Cout, lanes), jnp.float32),
        grid_spec=pltpu.PrefetchScalarGridSpec(
            num_scalar_prefetch=0,
            grid=(G,),
            in_specs=[
                pl.BlockSpec((1, C1, Bb * Hi * Wi), lambda n: (n, 0, 0)),
                pl.BlockSpec((1, C2, lanes), lambda n: (n, 0, 0)),
                pl.BlockSpec(UTb.shape, lambda n: (0, 0)),
                pl.BlockSpec(MASK.shape, lambda n: (0, 0)),
                pl.BlockSpec(W1.shape, lambda n: (0, 0)),
                pl.BlockSpec(b1.shape, lambda n: (0, 0)),
                pl.BlockSpec(W2f.shape, lambda n: (0, 0)),
                pl.BlockSpec(b2.shape, lambda n: (0, 0)),
            ],
            out_specs=pl.BlockSpec((1, Cout, lanes), lambda n: (n, 0, 0)),
        ),
        compiler_params=pltpu.CompilerParams(
            dimension_semantics=("parallel",),
            vmem_limit_bytes=32 * 1024 * 1024,
        ),
    )(x1f, x2f, UTb, MASK, W1, b1, W2f, b2)
    return _unfold_batch_lanes(out, Bb, H2, W2)


# ---------------------------------------------------------------------------
# Deterministic synthetic parameters
# ---------------------------------------------------------------------------
def make_params(key, ccat, cout):
    ks = jax.random.split(key, 24)
    it = iter(range(24))

    def nrm(shape, s):
        return s * jax.random.normal(ks[next(it)], shape, jnp.float32)

    def bn(co):
        return {"gamma": 1.0 + nrm((co,), 0.1), "beta": nrm((co,), 0.1),
                "mean": nrm((co,), 0.1), "var": 1.0 + jnp.abs(nrm((co,), 0.1))}

    return {
        "c1": {"dw_w": nrm((ccat, 1, 3, 3), 0.25), "dw_b": nrm((ccat,), 0.1),
               "pw_w": nrm((cout, ccat, 1, 1), 0.25), "pw_b": nrm((cout,), 0.1),
               **bn(cout)},
        "c2": {"dw_w": nrm((cout, 1, 3, 3), 0.25), "dw_b": nrm((cout,), 0.1),
               "pw_w": nrm((cout, cout, 1, 1), 0.25), "pw_b": nrm((cout,), 0.1),
               **bn(cout)},
        "c":  {"w": nrm((cout, ccat, 1, 1), 0.25), "b": nrm((cout,), 0.1),
               **bn(cout)},
    }


# ---------------------------------------------------------------------------
# Pure-JAX reference (independent implementation) for validation
# ---------------------------------------------------------------------------
def _bilinear_up_align_corners_ref(x, Ho, Wo):
    N, C, H, W = x.shape
    hs = jnp.linspace(0.0, H - 1.0, Ho)
    ws = jnp.linspace(0.0, W - 1.0, Wo)
    h0 = jnp.floor(hs).astype(jnp.int32)
    w0 = jnp.floor(ws).astype(jnp.int32)
    h1 = jnp.minimum(h0 + 1, H - 1)
    w1 = jnp.minimum(w0 + 1, W - 1)
    fh = (hs - h0)[None, None, :, None]
    fw = (ws - w0)[None, None, None, :]
    xa, xb = x[:, :, h0, :], x[:, :, h1, :]
    x00, x01 = xa[:, :, :, w0], xa[:, :, :, w1]
    x10, x11 = xb[:, :, :, w0], xb[:, :, :, w1]
    return (x00 * (1 - fh) * (1 - fw) + x01 * (1 - fh) * fw +
            x10 * fh * (1 - fw) + x11 * fh * fw)


def _ref_dwconv(x, p):
    C = x.shape[1]
    y = jax.lax.conv_general_dilated(
        x, p["dw_w"], (1, 1), [(1, 1), (1, 1)],
        dimension_numbers=("NCHW", "OIHW", "NCHW"), feature_group_count=C)
    y = y + p["dw_b"][None, :, None, None]
    y = jax.lax.conv_general_dilated(
        y, p["pw_w"], (1, 1), [(0, 0), (0, 0)],
        dimension_numbers=("NCHW", "OIHW", "NCHW"))
    return y + p["pw_b"][None, :, None, None]


def _ref_bn(x, p):
    return (p["gamma"][None, :, None, None] * (x - p["mean"][None, :, None, None])
            / jnp.sqrt(p["var"][None, :, None, None] + BN_EPS)
            + p["beta"][None, :, None, None])


def dwres_up_ref(x1, x2, params):
    _, _, Hi, Wi = x1.shape
    _, _, H2, W2 = x2.shape
    xu = _bilinear_up_align_corners_ref(x1.astype(jnp.float32), 2 * Hi, 2 * Wi)
    dY, dX = H2 - xu.shape[2], W2 - xu.shape[3]
    xu = jnp.pad(xu, ((0, 0), (0, 0),
                      (dY // 2, dY - dY // 2), (dX // 2, dX - dX // 2)))
    x = jnp.concatenate([x2.astype(jnp.float32), xu], axis=1)
    re = jax.lax.conv_general_dilated(
        x, params["c"]["w"], (1, 1), [(0, 0), (0, 0)],
        dimension_numbers=("NCHW", "OIHW", "NCHW"))
    re = _ref_bn(re + params["c"]["b"][None, :, None, None], params["c"])
    y = jnp.maximum(_ref_bn(_ref_dwconv(x, params["c1"]), params["c1"]), 0.0)
    y = _ref_bn(_ref_dwconv(y, params["c2"]), params["c2"])
    return jnp.maximum(y + re, 0.0)


if __name__ == "__main__":
    N, Cin, Cout = 2, 4, 8
    Hi = Wi = 8        # coarse (pre-upsample) resolution
    H2 = W2 = 16       # skip-connection resolution

    key = jax.random.PRNGKey(0)
    k1, k2, kp = jax.random.split(key, 3)
    x1 = jax.random.normal(k1, (N, Cin, Hi, Wi), jnp.float32)
    x2 = jax.random.normal(k2, (N, Cin, H2, W2), jnp.float32)
    params = make_params(kp, 2 * Cin, Cout)

    out = jax.block_until_ready(dwres_up_pallas(x1, x2, params))
    ref = jax.block_until_ready(dwres_up_ref(x1, x2, params))

    assert out.shape == (N, Cout, H2, W2), out.shape
    err = float(jnp.max(jnp.abs(out - ref)))
    # bf16 MXU inputs -> slightly looser tolerance than the all-f32 variant.
    assert jnp.allclose(out, ref, atol=5e-2, rtol=5e-2), err
    print("KERNEL_OK")
</pallas_src>

<mosaic_0001>
module attributes {stable_mosaic.version = 11 : i64} {
  func.func @dwres_up_kernel(%arg0: i32, %arg1: memref<1x4x128xf32, #tpu.memory_space<vmem>>, %arg2: memref<1x4x512xf32, #tpu.memory_space<vmem>>, %arg3: memref<128x512xbf16, #tpu.memory_space<vmem>>, %arg4: memref<9x512xf32, #tpu.memory_space<vmem>>, %arg5: memref<16x72xbf16, #tpu.memory_space<vmem>>, %arg6: memref<16x1xf32, #tpu.memory_space<vmem>>, %arg7: memref<8x72xbf16, #tpu.memory_space<vmem>>, %arg8: memref<8x1xf32, #tpu.memory_space<vmem>>, %arg9: memref<1x8x512xf32, #tpu.memory_space<vmem>>) attributes {dimension_semantics = [#tpu.dimension_semantics<parallel>], iteration_bounds = array<i64: 1>, scalar_prefetch = 0 : i64, scratch_operands = 0 : i64, tpu.core_type = #tpu.core_type<tc>, window_params = [{transform_indices = @transform_0, window_bounds = array<i64: 1, 4, 128>}, {transform_indices = @transform_1, window_bounds = array<i64: 1, 4, 512>}, {pipeline_mode = #tpu.pipeline_mode<synchronous>, transform_indices = @transform_2, window_bounds = array<i64: 128, 512>}, {pipeline_mode = #tpu.pipeline_mode<synchronous>, transform_indices = @transform_3, window_bounds = array<i64: 9, 512>}, {pipeline_mode = #tpu.pipeline_mode<synchronous>, transform_indices = @transform_4, window_bounds = array<i64: 16, 72>}, {pipeline_mode = #tpu.pipeline_mode<synchronous>, transform_indices = @transform_5, window_bounds = array<i64: 16, 1>}, {pipeline_mode = #tpu.pipeline_mode<synchronous>, transform_indices = @transform_6, window_bounds = array<i64: 8, 72>}, {pipeline_mode = #tpu.pipeline_mode<synchronous>, transform_indices = @transform_7, window_bounds = array<i64: 8, 1>}, {transform_indices = @transform_8, window_bounds = array<i64: 1, 8, 512>}]} {
    %c0 = arith.constant 0 : index
    %c0_0 = arith.constant 0 : index
    %c0_1 = arith.constant 0 : index
    %0 = vector.load %arg1[%c0, %c0_0, %c0_1] : memref<1x4x128xf32, #tpu.memory_space<vmem>>, vector<1x4x128xf32>
    %1 = vector.shape_cast %0 : vector<1x4x128xf32> to vector<4x128xf32>
    %c0_2 = arith.constant 0 : index
    %c0_3 = arith.constant 0 : index
    %c0_4 = arith.constant 0 : index
    %2 = vector.load %arg2[%c0_2, %c0_3, %c0_4] : memref<1x4x512xf32, #tpu.memory_space<vmem>>, vector<1x4x512xf32>
    %3 = vector.shape_cast %2 : vector<1x4x512xf32> to vector<4x512xf32>
    %c0_5 = arith.constant 0 : index
    %c0_6 = arith.constant 0 : index
    %4 = vector.load %arg4[%c0_5, %c0_6] : memref<9x512xf32, #tpu.memory_space<vmem>>, vector<9x512xf32>
    %5 = arith.truncf %1 : vector<4x128xf32> to vector<4x128xbf16>
    %c0_7 = arith.constant 0 : index
    %c0_8 = arith.constant 0 : index
    %6 = vector.load %arg3[%c0_7, %c0_8] : memref<128x512xbf16, #tpu.memory_space<vmem>>, vector<128x512xbf16>
    %cst = arith.constant dense<0.000000e+00> : vector<4x512xf32>
    %7 = tpu.matmul %5, %6, %cst {dimension_numbers = #tpu.dot_dimension_numbers<[1], [0], [0], [1], [0, 0, 1, 1], [], []>} : vector<4x128xbf16>, vector<128x512xbf16>, vector<4x512xf32> -> vector<4x512xf32>
    %8 = tpu.concatenate %3, %7 in 0 : vector<4x512xf32>, vector<4x512xf32> -> vector<8x512xf32>
    %c17_i32 = arith.constant 17 : i32
    %9 = tpu.dynamic_rotate %8 by %c17_i32 dim 1 : vector<8x512xf32>, i32 -> vector<8x512xf32>
    %10 = vector.extract_strided_slice %4 {offsets = [0, 0], sizes = [1, 512], strides = [1, 1]} : vector<9x512xf32> to vector<1x512xf32>
    %11 = vector.broadcast %10 : vector<1x512xf32> to vector<8x512xf32>
    %12 = arith.mulf %9, %11 : vector<8x512xf32>
    %c16_i32 = arith.constant 16 : i32
    %13 = tpu.dynamic_rotate %8 by %c16_i32 dim 1 : vector<8x512xf32>, i32 -> vector<8x512xf32>
    %14 = vector.extract_strided_slice %4 {offsets = [1, 0], sizes = [1, 512], strides = [1, 1]} : vector<9x512xf32> to vector<1x512xf32>
    %15 = vector.broadcast %14 : vector<1x512xf32> to vector<8x512xf32>
    %16 = arith.mulf %13, %15 : vector<8x512xf32>
    %c15_i32 = arith.constant 15 : i32
    %17 = tpu.dynamic_rotate %8 by %c15_i32 dim 1 : vector<8x512xf32>, i32 -> vector<8x512xf32>
    %18 = vector.extract_strided_slice %4 {offsets = [2, 0], sizes = [1, 512], strides = [1, 1]} : vector<9x512xf32> to vector<1x512xf32>
    %19 = vector.broadcast %18 : vector<1x512xf32> to vector<8x512xf32>
    %20 = arith.mulf %17, %19 : vector<8x512xf32>
    %c1_i32 = arith.constant 1 : i32
    %21 = tpu.dynamic_rotate %8 by %c1_i32 dim 1 : vector<8x512xf32>, i32 -> vector<8x512xf32>
    %22 = vector.extract_strided_slice %4 {offsets = [3, 0], sizes = [1, 512], strides = [1, 1]} : vector<9x512xf32> to vector<1x512xf32>
    %23 = vector.broadcast %22 : vector<1x512xf32> to vector<8x512xf32>
    %24 = arith.mulf %21, %23 : vector<8x512xf32>
    %c511_i32 = arith.constant 511 : i32
    %25 = tpu.dynamic_rotate %8 by %c511_i32 dim 1 : vector<8x512xf32>, i32 -> vector<8x512xf32>
    %26 = vector.extract_strided_slice %4 {offsets = [5, 0], sizes = [1, 512], strides = [1, 1]} : vector<9x512xf32> to vector<1x512xf32>
    %27 = vector.broadcast %26 : vector<1x512xf32> to vector<8x512xf32>
    %28 = arith.mulf %25, %27 : vector<8x512xf32>
    %c497_i32 = arith.constant 497 : i32
    %29 = tpu.dynamic_rotate %8 by %c497_i32 dim 1 : vector<8x512xf32>, i32 -> vector<8x512xf32>
    %30 = vector.extract_strided_slice %4 {offsets = [6, 0], sizes = [1, 512], strides = [1, 1]} : vector<9x512xf32> to vector<1x512xf32>
    %31 = vector.broadcast %30 : vector<1x512xf32> to vector<8x512xf32>
    %32 = arith.mulf %29, %31 : vector<8x512xf32>
    %c496_i32 = arith.constant 496 : i32
    %33 = tpu.dynamic_rotate %8 by %c496_i32 dim 1 : vector<8x512xf32>, i32 -> vector<8x512xf32>
    %34 = vector.extract_strided_slice %4 {offsets = [7, 0], sizes = [1, 512], strides = [1, 1]} : vector<9x512xf32> to vector<1x512xf32>
    %35 = vector.broadcast %34 : vector<1x512xf32> to vector<8x512xf32>
    %36 = arith.mulf %33, %35 : vector<8x512xf32>
    %c495_i32 = arith.constant 495 : i32
    %37 = tpu.dynamic_rotate %8 by %c495_i32 dim 1 : vector<8x512xf32>, i32 -> vector<8x512xf32>
    %38 = vector.extract_strided_slice %4 {offsets = [8, 0], sizes = [1, 512], strides = [1, 1]} : vector<9x512xf32> to vector<1x512xf32>
    %39 = vector.broadcast %38 : vector<1x512xf32> to vector<8x512xf32>
    %40 = arith.mulf %37, %39 : vector<8x512xf32>
    %41 = tpu.concatenate %12, %16, %20, %24, %8, %28, %32, %36, %40 in 0 : vector<8x512xf32>, vector<8x512xf32>, vector<8x512xf32>, vector<8x512xf32>, vector<8x512xf32>, vector<8x512xf32>, vector<8x512xf32>, vector<8x512xf32>, vector<8x512xf32> -> vector<72x512xf32>
    %c0_9 = arith.constant 0 : index
    %c0_10 = arith.constant 0 : index
    %42 = vector.load %arg5[%c0_9, %c0_10] : memref<16x72xbf16, #tpu.memory_space<vmem>>, vector<16x72xbf16>
    %43 = arith.truncf %41 : vector<72x512xf32> to vector<72x512xbf16>
    %cst_11 = arith.constant dense<0.000000e+00> : vector<16x512xf32>
    %44 = tpu.matmul %42, %43, %cst_11 {dimension_numbers = #tpu.dot_dimension_numbers<[1], [0], [0], [1], [0, 0, 1, 1], [], []>} : vector<16x72xbf16>, vector<72x512xbf16>, vector<16x512xf32> -> vector<16x512xf32>
    %c0_12 = arith.constant 0 : index
    %c0_13 = arith.constant 0 : index
    %45 = vector.load %arg6[%c0_12, %c0_13] : memref<16x1xf32, #tpu.memory_space<vmem>>, vector<16x1xf32>
    %46 = vector.broadcast %45 : vector<16x1xf32> to vector<16x512xf32>
    %47 = arith.addf %44, %46 : vector<16x512xf32>
    %48 = vector.extract_strided_slice %47 {offsets = [0, 0], sizes = [8, 512], strides = [1, 1]} : vector<16x512xf32> to vector<8x512xf32>
    %cst_14 = arith.constant 0.000000e+00 : f32
    %49 = vector.broadcast %cst_14 : f32 to vector<8x512xf32>
    %50 = arith.maximumf %48, %49 : vector<8x512xf32>
    %51 = vector.extract_strided_slice %47 {offsets = [8, 0], sizes = [8, 512], strides = [1, 1]} : vector<16x512xf32> to vector<8x512xf32>
    %c17_i32_15 = arith.constant 17 : i32
    %52 = tpu.dynamic_rotate %50 by %c17_i32_15 dim 1 : vector<8x512xf32>, i32 -> vector<8x512xf32>
    %53 = vector.extract_strided_slice %4 {offsets = [0, 0], sizes = [1, 512], strides = [1, 1]} : vector<9x512xf32> to vector<1x512xf32>
    %54 = vector.broadcast %53 : vector<1x512xf32> to vector<8x512xf32>
    %55 = arith.mulf %52, %54 : vector<8x512xf32>
    %c16_i32_16 = arith.constant 16 : i32
    %56 = tpu.dynamic_rotate %50 by %c16_i32_16 dim 1 : vector<8x512xf32>, i32 -> vector<8x512xf32>
    %57 = vector.extract_strided_slice %4 {offsets = [1, 0], sizes = [1, 512], strides = [1, 1]} : vector<9x512xf32> to vector<1x512xf32>
    %58 = vector.broadcast %57 : vector<1x512xf32> to vector<8x512xf32>
    %59 = arith.mulf %56, %58 : vector<8x512xf32>
    %c15_i32_17 = arith.constant 15 : i32
    %60 = tpu.dynamic_rotate %50 by %c15_i32_17 dim 1 : vector<8x512xf32>, i32 -> vector<8x512xf32>
    %61 = vector.extract_strided_slice %4 {offsets = [2, 0], sizes = [1, 512], strides = [1, 1]} : vector<9x512xf32> to vector<1x512xf32>
    %62 = vector.broadcast %61 : vector<1x512xf32> to vector<8x512xf32>
    %63 = arith.mulf %60, %62 : vector<8x512xf32>
    %c1_i32_18 = arith.constant 1 : i32
    %64 = tpu.dynamic_rotate %50 by %c1_i32_18 dim 1 : vector<8x512xf32>, i32 -> vector<8x512xf32>
    %65 = vector.extract_strided_slice %4 {offsets = [3, 0], sizes = [1, 512], strides = [1, 1]} : vector<9x512xf32> to vector<1x512xf32>
    %66 = vector.broadcast %65 : vector<1x512xf32> to vector<8x512xf32>
    %67 = arith.mulf %64, %66 : vector<8x512xf32>
    %c511_i32_19 = arith.constant 511 : i32
    %68 = tpu.dynamic_rotate %50 by %c511_i32_19 dim 1 : vector<8x512xf32>, i32 -> vector<8x512xf32>
    %69 = vector.extract_strided_slice %4 {offsets = [5, 0], sizes = [1, 512], strides = [1, 1]} : vector<9x512xf32> to vector<1x512xf32>
    %70 = vector.broadcast %69 : vector<1x512xf32> to vector<8x512xf32>
    %71 = arith.mulf %68, %70 : vector<8x512xf32>
    %c497_i32_20 = arith.constant 497 : i32
    %72 = tpu.dynamic_rotate %50 by %c497_i32_20 dim 1 : vector<8x512xf32>, i32 -> vector<8x512xf32>
    %73 = vector.extract_strided_slice %4 {offsets = [6, 0], sizes = [1, 512], strides = [1, 1]} : vector<9x512xf32> to vector<1x512xf32>
    %74 = vector.broadcast %73 : vector<1x512xf32> to vector<8x512xf32>
    %75 = arith.mulf %72, %74 : vector<8x512xf32>
    %c496_i32_21 = arith.constant 496 : i32
    %76 = tpu.dynamic_rotate %50 by %c496_i32_21 dim 1 : vector<8x512xf32>, i32 -> vector<8x512xf32>
    %77 = vector.extract_strided_slice %4 {offsets = [7, 0], sizes = [1, 512], strides = [1, 1]} : vector<9x512xf32> to vector<1x512xf32>
    %78 = vector.broadcast %77 : vector<1x512xf32> to vector<8x512xf32>
    %79 = arith.mulf %76, %78 : vector<8x512xf32>
    %c495_i32_22 = arith.constant 495 : i32
    %80 = tpu.dynamic_rotate %50 by %c495_i32_22 dim 1 : vector<8x512xf32>, i32 -> vector<8x512xf32>
    %81 = vector.extract_strided_slice %4 {offsets = [8, 0], sizes = [1, 512], strides = [1, 1]} : vector<9x512xf32> to vector<1x512xf32>
    %82 = vector.broadcast %81 : vector<1x512xf32> to vector<8x512xf32>
    %83 = arith.mulf %80, %82 : vector<8x512xf32>
    %84 = tpu.concatenate %55, %59, %63, %67, %50, %71, %75, %79, %83 in 0 : vector<8x512xf32>, vector<8x512xf32>, vector<8x512xf32>, vector<8x512xf32>, vector<8x512xf32>, vector<8x512xf32>, vector<8x512xf32>, vector<8x512xf32>, vector<8x512xf32> -> vector<72x512xf32>
    %c0_23 = arith.constant 0 : index
    %c0_24 = arith.constant 0 : index
    %85 = vector.load %arg7[%c0_23, %c0_24] : memref<8x72xbf16, #tpu.memory_space<vmem>>, vector<8x72xbf16>
    %86 = arith.truncf %84 : vector<72x512xf32> to vector<72x512xbf16>
    %cst_25 = arith.constant dense<0.000000e+00> : vector<8x512xf32>
    %87 = tpu.matmul %85, %86, %cst_25 {dimension_numbers = #tpu.dot_dimension_numbers<[1], [0], [0], [1], [0, 0, 1, 1], [], []>} : vector<8x72xbf16>, vector<72x512xbf16>, vector<8x512xf32> -> vector<8x512xf32>
    %c0_26 = arith.constant 0 : index
    %c0_27 = arith.constant 0 : index
    %88 = vector.load %arg8[%c0_26, %c0_27] : memref<8x1xf32, #tpu.memory_space<vmem>>, vector<8x1xf32>
    %89 = vector.broadcast %88 : vector<8x1xf32> to vector<8x512xf32>
    %90 = arith.addf %87, %89 : vector<8x512xf32>
    %91 = arith.addf %90, %51 : vector<8x512xf32>
    %cst_28 = arith.constant 0.000000e+00 : f32
    %92 = vector.broadcast %cst_28 : f32 to vector<8x512xf32>
    %93 = arith.maximumf %91, %92 : vector<8x512xf32>
    %c0_29 = arith.constant 0 : index
    %c0_30 = arith.constant 0 : index
    %c0_31 = arith.constant 0 : index
    %94 = vector.load %arg9[%c0_29, %c0_30, %c0_31] : memref<1x8x512xf32, #tpu.memory_space<vmem>>, vector<1x8x512xf32>
    %95 = vector.shape_cast %94 : vector<1x8x512xf32> to vector<8x512xf32>
    %96 = vector.shape_cast %93 : vector<8x512xf32> to vector<1x8x512xf32>
    tpu.vector_store %arg9[%c0_29, %c0_30, %c0_31], %96 {strides = array<i32>} : memref<1x8x512xf32, #tpu.memory_space<vmem>>, vector<1x8x512xf32>,
    return
  }
  func.func @transform_0(%arg0: i32) -> (i32, i32, i32) {
    %c0_i32 = arith.constant 0 : i32
    %c0_i32_0 = arith.constant 0 : i32
    %c0_i32_1 = arith.constant 0 : i32
    return %arg0, %c0_i32, %c0_i32_0 : i32, i32, i32
  }
  func.func @transform_1(%arg0: i32) -> (i32, i32, i32) {
    %c0_i32 = arith.constant 0 : i32
    %c0_i32_0 = arith.constant 0 : i32
    %c0_i32_1 = arith.constant 0 : i32
    return %arg0, %c0_i32, %c0_i32_0 : i32, i32, i32
  }
  func.func @transform_2(%arg0: i32) -> (i32, i32) {
    %c0_i32 = arith.constant 0 : i32
    %c0_i32_0 = arith.constant 0 : i32
    %c0_i32_1 = arith.constant 0 : i32
    return %c0_i32, %c0_i32_0 : i32, i32
  }
  func.func @transform_3(%arg0: i32) -> (i32, i32) {
    %c0_i32 = arith.constant 0 : i32
    %c0_i32_0 = arith.constant 0 : i32
    %c0_i32_1 = arith.constant 0 : i32
    return %c0_i32, %c0_i32_0 : i32, i32
  }
  func.func @transform_4(%arg0: i32) -> (i32, i32) {
    %c0_i32 = arith.constant 0 : i32
    %c0_i32_0 = arith.constant 0 : i32
    %c0_i32_1 = arith.constant 0 : i32
    return %c0_i32, %c0_i32_0 : i32, i32
  }
  func.func @transform_5(%arg0: i32) -> (i32, i32) {
    %c0_i32 = arith.constant 0 : i32
    %c0_i32_0 = arith.constant 0 : i32
    %c0_i32_1 = arith.constant 0 : i32
    return %c0_i32, %c0_i32_0 : i32, i32
  }
  func.func @transform_6(%arg0: i32) -> (i32, i32) {
    %c0_i32 = arith.constant 0 : i32
    %c0_i32_0 = arith.constant 0 : i32
    %c0_i32_1 = arith.constant 0 : i32
    return %c0_i32, %c0_i32_0 : i32, i32
  }
  func.func @transform_7(%arg0: i32) -> (i32, i32) {
    %c0_i32 = arith.constant 0 : i32
    %c0_i32_0 = arith.constant 0 : i32
    %c0_i32_1 = arith.constant 0 : i32
    return %c0_i32, %c0_i32_0 : i32, i32
  }
  func.func @transform_8(%arg0: i32) -> (i32, i32, i32) {
    %c0_i32 = arith.constant 0 : i32
    %c0_i32_0 = arith.constant 0 : i32
    %c0_i32_1 = arith.constant 0 : i32
    return %arg0, %c0_i32, %c0_i32_0 : i32, i32, i32
  }
}

</mosaic_0001>

<llo_original>
// kernel: tpu_custom_call.1
$region0: #{tpu_custom_call.1}
  #allocation0 [shape = 'u32[]', space=smem, size = 0x4, offset = 0x4, fixed_abs, tag = 'smem constant byte address 0x4 - core index']
  #allocation1 [shape = 'u32[144,128]{1,0:T(1,128)}', space=vmem, size = 0x12000, scoped, tag = 'internal scratch']
  %s0 = inlined_call_operand.vmem [shape: f32[1,4,128], index: 0, kind: input, shape index: {}]
  %s1 = inlined_call_operand.vmem [shape: f32[1,4,512], index: 1, kind: input, shape index: {}]
  %s2 = inlined_call_operand.hbm [shape: bf16[128,512], index: 2, kind: input, shape index: {}]
  %s3 = inlined_call_operand.hbm [shape: f32[9,512], index: 3, kind: input, shape index: {}]
  %s4 = inlined_call_operand.vmem [shape: bf16[16,72], index: 4, kind: input, shape index: {}]
  %s5 = inlined_call_operand.vmem [shape: f32[16,1], index: 5, kind: input, shape index: {}]
  %s6 = inlined_call_operand.vmem [shape: bf16[8,72], index: 6, kind: input, shape index: {}]
  %s7 = inlined_call_operand.vmem [shape: f32[8,1], index: 7, kind: input, shape index: {}]
  %s8 = inlined_call_operand.hbm [shape: f32[1,8,512], index: 8, kind: output, shape index: {}]
  %s9 = sld [smem:[#allocation0]]
  $region50: #{tpu_custom_call.1} parent=0
    _
  %s11 = ssub.s32 1, %s9
  %s12 = scalar_select 0, %s11, %s9
  $region1: #{tpu_custom_call.1} parent=0
    #allocation2 [shape = 'u8[131072]{0}', space=vmem, size = 0x20000, scoped, tag = 'input window, operand 2, single buffered']
    #allocation3 [shape = 's32[1]{0}', space=sflag, size = 0x4, scoped, tag = 'scoped memory for tpu_custom_call.1']
    #allocation4 [shape = 's32[1]{0}', space=sflag, size = 0x4, scoped, tag = 'scoped memory for tpu_custom_call.1']
    #allocation5 [shape = 'u8[32768]{0}', space=vmem, size = 0x8000, scoped, tag = 'input window, operand 3, single buffered']
    #allocation6 [shape = 's32[1]{0}', space=sflag, size = 0x4, scoped, tag = 'scoped memory for tpu_custom_call.1']
    #allocation7 [shape = 'u8[16384]{0}', space=vmem, size = 0x4000, scoped, tag = 'output window, operand 0, single buffered']
    %13 = vsyncpa [#allocation3], 0
    %14 = vsyncpa [#allocation6], 0
    %15 = vsyncpa [#allocation4], 0
    // Predicated region
    $region2: #{tpu_custom_call.1} parent=1 // pred_check
      _
    $region3: #{tpu_custom_call.1} parent=1 // pred_check_branch
      %17 = sbr.rel (0) target = $region5
    $region4: #{tpu_custom_call.1} parent=1 // pred_region
      _
    $region5: #{tpu_custom_call.1} parent=1 // pred_fallthru
      _
    // Predicated region
    $region6: #{tpu_custom_call.1} parent=1 // pred_check
      _
    $region7: #{tpu_custom_call.1} parent=1 // pred_check_branch
      %19 = sbr.rel (0) target = $region9
    $region8: #{tpu_custom_call.1} parent=1 // pred_region
      _
    $region9: #{tpu_custom_call.1} parent=1 // pred_fallthru
      _
    // Predicated region
    $region10: #{tpu_custom_call.1} parent=1 // pred_check
      _
    $region11: #{tpu_custom_call.1} parent=1 // pred_check_branch
      %21 = sbr.rel (0) target = $region13
    $region12: #{tpu_custom_call.1} parent=1 // pred_region
      %s23 = ssub.s32 4096, 4096
      %24 = vsyncadd [#allocation3], %s23
      %s25 = sshll.u32 [#allocation2], 4
      %s26 = int_to_ptr.vmem [resolvable:$true] %s25
      %31 = dma.hbm_to_vmem [thread:$0]  %s2, 4096, %s26, [#allocation3], 256, 256, 16
    $region13: #{tpu_custom_call.1} parent=1 // pred_fallthru
      _
    // Predicated region
    $region14: #{tpu_custom_call.1} parent=1 // pred_check
      _
    $region15: #{tpu_custom_call.1} parent=1 // pred_check_branch
      %33 = sbr.rel (0) target = $region17
    $region16: #{tpu_custom_call.1} parent=1 // pred_region
      %s35 = ssub.s32 1024, 1024
      %36 = vsyncadd [#allocation6], %s35
      %s37 = sshll.u32 [#allocation5], 4
      %s38 = int_to_ptr.vmem [resolvable:$true] %s37
      %43 = dma.hbm_to_vmem [thread:$0]  %s3, 1024, %s38, [#allocation6], 512, 512, 32
    $region17: #{tpu_custom_call.1} parent=1 // pred_fallthru
      _
    // Predicated region
    $region18: #{tpu_custom_call.1} parent=1 // pred_check
      _
    $region19: #{tpu_custom_call.1} parent=1 // pred_check_branch
      %45 = sbr.rel (0) target = $region21
    $region20: #{tpu_custom_call.1} parent=1 // pred_region
      _
    $region21: #{tpu_custom_call.1} parent=1 // pred_fallthru
      _
    // Predicated region
    $region22: #{tpu_custom_call.1} parent=1 // pred_check
      _
    $region23: #{tpu_custom_call.1} parent=1 // pred_check_branch
      %47 = sbr.rel (0) target = $region25
    $region24: #{tpu_custom_call.1} parent=1 // pred_region
      _
    $region25: #{tpu_custom_call.1} parent=1 // pred_fallthru
      _
    // Predicated region
    $region26: #{tpu_custom_call.1} parent=1 // pred_check
      _
    $region27: #{tpu_custom_call.1} parent=1 // pred_check_branch
      %49 = sbr.rel (0) target = $region29
    $region28: #{tpu_custom_call.1} parent=1 // pred_region
      _
    $region29: #{tpu_custom_call.1} parent=1 // pred_fallthru
      _
    // Predicated region
    $region30: #{tpu_custom_call.1} parent=1 // pred_check
      _
    $region31: #{tpu_custom_call.1} parent=1 // pred_check_branch
      %51 = sbr.rel (0) target = $region33
    $region32: #{tpu_custom_call.1} parent=1 // pred_region
      _
    $region33: #{tpu_custom_call.1} parent=1 // pred_fallthru
      _
    // Predicated region
    $region34: #{tpu_custom_call.1} parent=1 // pred_check
      _
    $region35: #{tpu_custom_call.1} parent=1 // pred_check_branch
      %53 = sbr.rel (0) target = $region37
    $region36: #{tpu_custom_call.1} parent=1 // pred_region
      %54 = dma.done [#allocation3], 4096
    $region37: #{tpu_custom_call.1} parent=1 // pred_fallthru
      _
    // Predicated region
    $region38: #{tpu_custom_call.1} parent=1 // pred_check
      _
    $region39: #{tpu_custom_call.1} parent=1 // pred_check_branch
      %56 = sbr.rel (0) target = $region41
    $region40: #{tpu_custom_call.1} parent=1 // pred_region
      %57 = dma.done [#allocation6], 1024
    $region41: #{tpu_custom_call.1} parent=1 // pred_fallthru
      _
    %v59 = vld [vmem:[%s0] sm:$0xf]
    %v60 = vld [vmem:[%s1] sm:$0xff]
    %v61 = vld [vmem:[%s1 + $0x8] sm:$0xff]
    %v62 = vld [vmem:[#allocation5] sm:$0xff]
    %v63 = vld [vmem:[#allocation5 + $0x8] sm:$0xff]
    %v64 = vld [vmem:[#allocation5 + $0x10] sm:$0xff]
    %v65 = vld [vmem:[#allocation5 + $0x18] sm:$0xff]
    %v66 = vld [vmem:[#allocation5 + $0x20] sm:$0x1]
    %v67 = vld [vmem:[#allocation5 + $0x28] sm:$0x1]
    %v68 = vld [vmem:[#allocation5 + $0x30] sm:$0x1]
    %v69 = vld [vmem:[#allocation5 + $0x38] sm:$0x1]
    %v70 = vpack.c.bf16 %v59, %v59
    %v71 = vld [vmem:[#allocation2] sm:$0xff]
    %v72 = vld [vmem:[#allocation2 + $0x8] sm:$0xff]
    %v73 = vld [vmem:[#allocation2 + $0x10] sm:$0xff]
    %v74 = vld [vmem:[#allocation2 + $0x18] sm:$0xff]
    %v75 = vld [vmem:[#allocation2 + $0x20] sm:$0xff]
    %v76 = vld [vmem:[#allocation2 + $0x28] sm:$0xff]
    %v77 = vld [vmem:[#allocation2 + $0x30] sm:$0xff]
    %v78 = vld [vmem:[#allocation2 + $0x38] sm:$0xff]
    %v79 = vld [vmem:[#allocation2 + $0x40] sm:$0xff]
    %v80 = vld [vmem:[#allocation2 + $0x48] sm:$0xff]
    %v81 = vld [vmem:[#allocation2 + $0x50] sm:$0xff]
    %v82 = vld [vmem:[#allocation2 + $0x58] sm:$0xff]
    %v83 = vld [vmem:[#allocation2 + $0x60] sm:$0xff]
    %v84 = vld [vmem:[#allocation2 + $0x68] sm:$0xff]
    %v85 = vld [vmem:[#allocation2 + $0x70] sm:$0xff]
    %v86 = vld [vmem:[#allocation2 + $0x78] sm:$0xff]
    %v87 = vld [vmem:[#allocation2 + $0x80] sm:$0xff]
    %v88 = vld [vmem:[#allocation2 + $0x88] sm:$0xff]
    %v89 = vld [vmem:[#allocation2 + $0x90] sm:$0xff]
    %v90 = vld [vmem:[#allocation2 + $0x98] sm:$0xff]
    %v91 = vld [vmem:[#allocation2 + $0xa0] sm:$0xff]
    %v92 = vld [vmem:[#allocation2 + $0xa8] sm:$0xff]
    %v93 = vld [vmem:[#allocation2 + $0xb0] sm:$0xff]
    %v94 = vld [vmem:[#allocation2 + $0xb8] sm:$0xff]
    %v95 = vld [vmem:[#allocation2 + $0xc0] sm:$0xff]
    %v96 = vld [vmem:[#allocation2 + $0xc8] sm:$0xff]
    %v97 = vld [vmem:[#allocation2 + $0xd0] sm:$0xff]
    %v98 = vld [vmem:[#allocation2 + $0xd8] sm:$0xff]
    %v99 = vld [vmem:[#allocation2 + $0xe0] sm:$0xff]
    %v100 = vld [vmem:[#allocation2 + $0xe8] sm:$0xff]
    %v101 = vld [vmem:[#allocation2 + $0xf0] sm:$0xff]
    %v102 = vld [vmem:[#allocation2 + $0xf8] sm:$0xff]
    %v135 = vunpack.c.l.b16 %v71
    %v136 = vunpack.c.h.b16 %v71
    %v137 = vunpack.c.l.b16 %v72
    %v138 = vunpack.c.h.b16 %v72
    %v139 = vunpack.c.l.b16 %v73
    %v140 = vunpack.c.h.b16 %v73
    %v141 = vunpack.c.l.b16 %v74
    %v142 = vunpack.c.h.b16 %v74
    %v143 = vunpack.c.l.b16 %v75
    %v144 = vunpack.c.h.b16 %v75
    %v145 = vunpack.c.l.b16 %v76
    %v146 = vunpack.c.h.b16 %v76
    %v147 = vunpack.c.l.b16 %v77
    %v148 = vunpack.c.h.b16 %v77
    %v149 = vunpack.c.l.b16 %v78
    %v150 = vunpack.c.h.b16 %v78
    %v151 = vunpack.c.l.b16 %v79
    %v152 = vunpack.c.h.b16 %v79
    %v153 = vunpack.c.l.b16 %v80
    %v154 = vunpack.c.h.b16 %v80
    %v155 = vunpack.c.l.b16 %v81
    %v156 = vunpack.c.h.b16 %v81
    %v157 = vunpack.c.l.b16 %v82
    %v158 = vunpack.c.h.b16 %v82
    %v159 = vunpack.c.l.b16 %v83
    %v160 = vunpack.c.h.b16 %v83
    %v161 = vunpack.c.l.b16 %v84
    %v162 = vunpack.c.h.b16 %v84
    %v163 = vunpack.c.l.b16 %v85
    %v164 = vunpack.c.h.b16 %v85
    %v165 = vunpack.c.l.b16 %v86
    %v166 = vunpack.c.h.b16 %v86
    %v167 = vunpack.c.l.b16 %v87
    %v168 = vunpack.c.h.b16 %v87
    %v169 = vunpack.c.l.b16 %v88
    %v170 = vunpack.c.h.b16 %v88
    %v171 = vunpack.c.l.b16 %v89
    %v172 = vunpack.c.h.b16 %v89
    %v173 = vunpack.c.l.b16 %v90
    %v174 = vunpack.c.h.b16 %v90
    %v175 = vunpack.c.l.b16 %v91
    %v176 = vunpack.c.h.b16 %v91
    %v177 = vunpack.c.l.b16 %v92
    %v178 = vunpack.c.h.b16 %v92
    %v179 = vunpack.c.l.b16 %v93
    %v180 = vunpack.c.h.b16 %v93
    %v181 = vunpack.c.l.b16 %v94
    %v182 = vunpack.c.h.b16 %v94
    %v183 = vunpack.c.l.b16 %v95
    %v184 = vunpack.c.h.b16 %v95
    %v185 = vunpack.c.l.b16 %v96
    %v186 = vunpack.c.h.b16 %v96
    %v187 = vunpack.c.l.b16 %v97
    %v188 = vunpack.c.h.b16 %v97
    %v189 = vunpack.c.l.b16 %v98
    %v190 = vunpack.c.h.b16 %v98
    %v191 = vunpack.c.l.b16 %v99
    %v192 = vunpack.c.h.b16 %v99
    %v193 = vunpack.c.l.b16 %v100
    %v194 = vunpack.c.h.b16 %v100
    %v195 = vunpack.c.l.b16 %v101
    %v196 = vunpack.c.h.b16 %v101
    %v197 = vunpack.c.l.b16 %v102
    %v198 = vunpack.c.h.b16 %v102
    %v199 = vpack.c.b16 %v139, %v135
    %v200 = vpack.c.b16 %v140, %v136
    %v201 = vpack.c.b16 %v141, %v137
    %v202 = vpack.c.b16 %v142, %v138
    %v203 = vpack.c.b16 %v147, %v143
    %v204 = vpack.c.b16 %v148, %v144
    %v205 = vpack.c.b16 %v149, %v145
    %v206 = vpack.c.b16 %v150, %v146
    %v207 = vpack.c.b16 %v155, %v151
    %v208 = vpack.c.b16 %v156, %v152
    %v209 = vpack.c.b16 %v157, %v153
    %v210 = vpack.c.b16 %v158, %v154
    %v211 = vpack.c.b16 %v163, %v159
    %v212 = vpack.c.b16 %v164, %v160
    %v213 = vpack.c.b16 %v165, %v161
    %v214 = vpack.c.b16 %v166, %v162
    %v215 = vpack.c.b16 %v171, %v167
    %v216 = vpack.c.b16 %v172, %v168
    %v217 = vpack.c.b16 %v173, %v169
    %v218 = vpack.c.b16 %v174, %v170
    %v219 = vpack.c.b16 %v179, %v175
    %v220 = vpack.c.b16 %v180, %v176
    %v221 = vpack.c.b16 %v181, %v177
    %v222 = vpack.c.b16 %v182, %v178
    %v223 = vpack.c.b16 %v187, %v183
    %v224 = vpack.c.b16 %v188, %v184
    %v225 = vpack.c.b16 %v189, %v185
    %v226 = vpack.c.b16 %v190, %v186
    %v227 = vpack.c.b16 %v195, %v191
    %v228 = vpack.c.b16 %v196, %v192
    %v229 = vpack.c.b16 %v197, %v193
    %v230 = vpack.c.b16 %v198, %v194
    %263 = vmatprep.subr.bf16.mxu0 %v200
    %264 = vmatpush1.bf16.msra.mxu0 %v199
    %265 = vmatprep.subr.bf16.mxu0 %v204
    %266 = vmatpush1.bf16.msra.mxu0 %v203
    %267 = vmatprep.subr.bf16.mxu0 %v208
    %268 = vmatpush1.bf16.msra.mxu0 %v207
    %269 = vmatprep.subr.bf16.mxu0 %v212
    %270 = vmatpush1.bf16.msra.mxu0 %v211
    %271 = vmatprep.subr.bf16.mxu0 %v216
    %272 = vmatpush1.bf16.msra.mxu0 %v215
    %273 = vmatprep.subr.bf16.mxu0 %v220
    %274 = vmatpush1.bf16.msra.mxu0 %v219
    %275 = vmatprep.subr.bf16.mxu0 %v224
    %276 = vmatpush1.bf16.msra.mxu0 %v223
    %277 = vmatprep.subr.bf16.mxu0 %v228
    %278 = vmatpush1.bf16.msra.mxu0 %v227
    %279 = vmatprep.subr.bf16.mxu0 0
    %280 = vmatpush1.bf16.msra.mxu0 0
    %281 = vmatprep.subr.bf16.mxu0 0
    %282 = vmatpush1.bf16.msra.mxu0 0
    %283 = vmatprep.subr.bf16.mxu0 0
    %284 = vmatpush1.bf16.msra.mxu0 0
    %285 = vmatprep.subr.bf16.mxu0 0
    %286 = vmatpush1.bf16.msra.mxu0 0
    %287 = vmatprep.subr.bf16.mxu0 0
    %288 = vmatpush1.bf16.msra.mxu0 0
    %289 = vmatprep.subr.bf16.mxu0 0
    %290 = vmatpush1.bf16.msra.mxu0 0
    %291 = vmatprep.subr.bf16.mxu0 0
    %292 = vmatpush1.bf16.msra.mxu0 0
    %293 = vmatprep.subr.bf16.mxu0 0
    %294 = vmatpush1.bf16.msra.mxu0 0
    %295 = vmatprep.mubr.bf16.mxu0 0
    %296 = vmatmul.mubr.bf16.gmra.mrb[0].mxu0 %v70
    %v297 = vpop.f32.mrb[0].mxu0
    %v298 = vadd.f32 0.0, %v297
    %v299 = vpop.f32.mrb[0].mxu0
    %v300 = vadd.f32 0.0, %v299
    %v301 = vpop.f32.mrb[0].mxu0
    %v302 = vpop.f32.mrb[0].mxu0
    %303 = vdwg.mxu0
    %304 = vmatprep.subr.bf16.mxu0 %v202
    %305 = vmatpush1.bf16.msra.mxu0 %v201
    %306 = vmatprep.subr.bf16.mxu0 %v206
    %307 = vmatpush1.bf16.msra.mxu0 %v205
    %308 = vmatprep.subr.bf16.mxu0 %v210
    %309 = vmatpush1.bf16.msra.mxu0 %v209
    %310 = vmatprep.subr.bf16.mxu0 %v214
    %311 = vmatpush1.bf16.msra.mxu0 %v213
    %312 = vmatprep.subr.bf16.mxu0 %v218
    %313 = vmatpush1.bf16.msra.mxu0 %v217
    %314 = vmatprep.subr.bf16.mxu0 %v222
    %315 = vmatpush1.bf16.msra.mxu0 %v221
    %316 = vmatprep.subr.bf16.mxu0 %v226
    %317 = vmatpush1.bf16.msra.mxu0 %v225
    %318 = vmatprep.subr.bf16.mxu0 %v230
    %319 = vmatpush1.bf16.msra.mxu0 %v229
    %320 = vmatprep.subr.bf16.mxu0 0
    %321 = vmatpush1.bf16.msra.mxu0 0
    %322 = vmatprep.subr.bf16.mxu0 0
    %323 = vmatpush1.bf16.msra.mxu0 0
    %324 = vmatprep.subr.bf16.mxu0 0
    %325 = vmatpush1.bf16.msra.mxu0 0
    %326 = vmatprep.subr.bf16.mxu0 0
    %327 = vmatpush1.bf16.msra.mxu0 0
    %328 = vmatprep.subr.bf16.mxu0 0
    %329 = vmatpush1.bf16.msra.mxu0 0
    %330 = vmatprep.subr.bf16.mxu0 0
    %331 = vmatpush1.bf16.msra.mxu0 0
    %332 = vmatprep.subr.bf16.mxu0 0
    %333 = vmatpush1.bf16.msra.mxu0 0
    %334 = vmatprep.subr.bf16.mxu0 0
    %335 = vmatpush1.bf16.msra.mxu0 0
    %336 = vmatprep.mubr.bf16.mxu0 0
    %337 = vmatmul.mubr.bf16.gmra.mrb[0].mxu0 %v70
    %v338 = vpop.f32.mrb[0].mxu0
    %v339 = vadd.f32 0.0, %v338
    %v340 = vpop.f32.mrb[0].mxu0
    %v341 = vadd.f32 0.0, %v340
    %v342 = vpop.f32.mrb[0].mxu0
    %v343 = vpop.f32.mrb[0].mxu0
    %344 = vdwg.mxu0
    %v347 = vcombine.high %v60, %v60
    %v348 = vcombine.high %v61, %v61
    %v355 = vrot.slane %v298, 4
    %v356 = vrot.slane %v300, 4
    %v357 = vrot.slane %v339, 4
    %v358 = vrot.slane %v341, 4
    %vm363 = vcmask 1043456
    %v364 = vsel %vm363, %v60, %v355
    %v365 = vsel %vm363, %v347, %v356
    %v366 = vsel %vm363, %v61, %v357
    %v367 = vsel %vm363, %v348, %v358
    %368 = vrot.lane.b32.xlu0 %v364, 17
    %v369 = vpop.permute.xlu0 %368
    %370 = vrot.lane.b32.xlu0 %v365, 17
    %v371 = vpop.permute.xlu0 %370
    %372 = vrot.lane.b32.xlu0 %v366, 17
    %v373 = vpop.permute.xlu0 %372
    %374 = vrot.lane.b32.xlu0 %v367, 17
    %v375 = vpop.permute.xlu0 %374
    %v376 = vlaneseq
    %v377 = vand.u32 %v376, 127
    %vm378 = vcmp.lt.s32.totalorder %v377, 17
    %v379 = vsel %vm378, %v373, %v375
    %v380 = vsel %vm378, %v371, %v373
    %v381 = vsel %vm378, %v369, %v371
    %v382 = vsel %vm378, %v375, %v369
    %v383 = vlaneseq
    %v384 = vshrl.u32 %v383, 7
    %v385 = vsub.s32 0, %v384
    %v386 = vrot.slane %v62, %v385
    %v387 = vlaneseq
    %v388 = vshrl.u32 %v387, 7
    %v389 = vsub.s32 0, %v388
    %v390 = vrot.slane %v63, %v389
    %v391 = vlaneseq
    %v392 = vshrl.u32 %v391, 7
    %v393 = vsub.s32 0, %v392
    %v394 = vrot.slane %v64, %v393
    %v395 = vlaneseq
    %v396 = vshrl.u32 %v395, 7
    %v397 = vsub.s32 0, %v396
    %v398 = vrot.slane %v65, %v397
    %v399 = vmul.f32 %v382, %v386
    %v400 = vmul.f32 %v381, %v390
    %v401 = vmul.f32 %v380, %v394
    %v402 = vmul.f32 %v379, %v398
    %403 = vrot.lane.b32.xlu0 %v364, 16
    %v404 = vpop.permute.xlu0 %403
    %405 = vrot.lane.b32.xlu0 %v365, 16
    %v406 = vpop.permute.xlu0 %405
    %407 = vrot.lane.b32.xlu0 %v366, 16
    %v408 = vpop.permute.xlu0 %407
    %409 = vrot.lane.b32.xlu0 %v367, 16
    %v410 = vpop.permute.xlu0 %409
    %vm411 = vcmp.lt.s32.totalorder %v377, 16
    %v412 = vsel %vm411, %v408, %v410
    %v413 = vsel %vm411, %v406, %v408
    %v414 = vsel %vm411, %v404, %v406
    %v415 = vsel %vm411, %v410, %v404
    %v416 = vlaneseq
    %v417 = vshrl.u32 %v416, 7
    %v418 = vsub.s32 1, %v417
    %v419 = vrot.slane %v62, %v418
    %v420 = vlaneseq
    %v421 = vshrl.u32 %v420, 7
    %v422 = vsub.s32 1, %v421
    %v423 = vrot.slane %v63, %v422
    %v424 = vlaneseq
    %v425 = vshrl.u32 %v424, 7
    %v426 = vsub.s32 1, %v425
    %v427 = vrot.slane %v64, %v426
    %v428 = vlaneseq
    %v429 = vshrl.u32 %v428, 7
    %v430 = vsub.s32 1, %v429
    %v431 = vrot.slane %v65, %v430
    %v432 = vmul.f32 %v415, %v419
    %v433 = vmul.f32 %v414, %v423
    %v434 = vmul.f32 %v413, %v427
    %v435 = vmul.f32 %v412, %v431
    %436 = vrot.lane.b32.xlu0 %v364, 15
    %v437 = vpop.permute.xlu0 %436
    %438 = vrot.lane.b32.xlu0 %v365, 15
    %v439 = vpop.permute.xlu0 %438
    %440 = vrot.lane.b32.xlu0 %v366, 15
    %v441 = vpop.permute.xlu0 %440
    %442 = vrot.lane.b32.xlu0 %v367, 15
    %v443 = vpop.permute.xlu0 %442
    %vm444 = vcmp.lt.s32.totalorder %v377, 15
    %v445 = vsel %vm444, %v441, %v443
    %v446 = vsel %vm444, %v439, %v441
    %v447 = vsel %vm444, %v437, %v439
    %v448 = vsel %vm444, %v443, %v437
    %v449 = vlaneseq
    %v450 = vshrl.u32 %v449, 7
    %v451 = vsub.s32 2, %v450
    %v452 = vrot.slane %v62, %v451
    %v453 = vlaneseq
    %v454 = vshrl.u32 %v453, 7
    %v455 = vsub.s32 2, %v454
    %v456 = vrot.slane %v63, %v455
    %v457 = vlaneseq
    %v458 = vshrl.u32 %v457, 7
    %v459 = vsub.s32 2, %v458
    %v460 = vrot.slane %v64, %v459
    %v461 = vlaneseq
    %v462 = vshrl.u32 %v461, 7
    %v463 = vsub.s32 2, %v462
    %v464 = vrot.slane %v65, %v463
    %v465 = vmul.f32 %v448, %v452
    %v466 = vmul.f32 %v447, %v456
    %v467 = vmul.f32 %v446, %v460
    %v468 = vmul.f32 %v445, %v464
    %469 = vrot.lane.b32.xlu0 %v364, 1
    %v470 = vpop.permute.xlu0 %469
    %471 = vrot.lane.b32.xlu0 %v365, 1
    %v472 = vpop.permute.xlu0 %471
    %473 = vrot.lane.b32.xlu0 %v366, 1
    %v474 = vpop.permute.xlu0 %473
    %475 = vrot.lane.b32.xlu0 %v367, 1
    %v476 = vpop.permute.xlu0 %475
    %vm477 = vcmp.lt.s32.totalorder %v377, 1
    %v478 = vsel %vm477, %v474, %v476
    %v479 = vsel %vm477, %v472, %v474
    %v480 = vsel %vm477, %v470, %v472
    %v481 = vsel %vm477, %v476, %v470
    %v482 = vlaneseq
    %v483 = vshrl.u32 %v482, 7
    %v484 = vsub.s32 3, %v483
    %v485 = vrot.slane %v62, %v484
    %v486 = vlaneseq
    %v487 = vshrl.u32 %v486, 7
    %v488 = vsub.s32 3, %v487
    %v489 = vrot.slane %v63, %v488
    %v490 = vlaneseq
    %v491 = vshrl.u32 %v490, 7
    %v492 = vsub.s32 3, %v491
    %v493 = vrot.slane %v64, %v492
    %v494 = vlaneseq
    %v495 = vshrl.u32 %v494, 7
    %v496 = vsub.s32 3, %v495
    %v497 = vrot.slane %v65, %v496
    %v498 = vmul.f32 %v481, %v485
    %v499 = vmul.f32 %v480, %v489
    %v500 = vmul.f32 %v479, %v493
    %v501 = vmul.f32 %v478, %v497
    %502 = vrot.lane.b32.xlu0 %v364, 127
    %v503 = vpop.permute.xlu0 %502
    %504 = vrot.lane.b32.xlu0 %v365, 127
    %v505 = vpop.permute.xlu0 %504
    %506 = vrot.lane.b32.xlu0 %v366, 127
    %v507 = vpop.permute.xlu0 %506
    %508 = vrot.lane.b32.xlu0 %v367, 127
    %v509 = vpop.permute.xlu0 %508
    %vm510 = vcmp.lt.s32.totalorder %v377, 127
    %v511 = vsel %vm510, %v507, %v509
    %v512 = vsel %vm510, %v505, %v507
    %v513 = vsel %vm510, %v503, %v505
    %v514 = vsel %vm510, %v509, %v503
    %v515 = vlaneseq
    %v516 = vshrl.u32 %v515, 7
    %v517 = vsub.s32 5, %v516
    %v518 = vrot.slane %v62, %v517
    %v519 = vlaneseq
    %v520 = vshrl.u32 %v519, 7
    %v521 = vsub.s32 5, %v520
    %v522 = vrot.slane %v63, %v521
    %v523 = vlaneseq
    %v524 = vshrl.u32 %v523, 7
    %v525 = vsub.s32 5, %v524
    %v526 = vrot.slane %v64, %v525
    %v527 = vlaneseq
    %v528 = vshrl.u32 %v527, 7
    %v529 = vsub.s32 5, %v528
    %v530 = vrot.slane %v65, %v529
    %v531 = vmul.f32 %v513, %v518
    %v532 = vmul.f32 %v512, %v522
    %v533 = vmul.f32 %v511, %v526
    %v534 = vmul.f32 %v514, %v530
    %535 = vrot.lane.b32.xlu0 %v364, 113
    %v536 = vpop.permute.xlu0 %535
    %537 = vrot.lane.b32.xlu0 %v365, 113
    %v538 = vpop.permute.xlu0 %537
    %539 = vrot.lane.b32.xlu0 %v366, 113
    %v540 = vpop.permute.xlu0 %539
    %541 = vrot.lane.b32.xlu0 %v367, 113
    %v542 = vpop.permute.xlu0 %541
    %vm543 = vcmp.lt.s32.totalorder %v377, 113
    %v544 = vsel %vm543, %v540, %v542
    %v545 = vsel %vm543, %v538, %v540
    %v546 = vsel %vm543, %v536, %v538
    %v547 = vsel %vm543, %v542, %v536
    %v548 = vlaneseq
    %v549 = vshrl.u32 %v548, 7
    %v550 = vsub.s32 6, %v549
    %v551 = vrot.slane %v62, %v550
    %v552 = vlaneseq
    %v553 = vshrl.u32 %v552, 7
    %v554 = vsub.s32 6, %v553
    %v555 = vrot.slane %v63, %v554
    %v556 = vlaneseq
    %v557 = vshrl.u32 %v556, 7
    %v558 = vsub.s32 6, %v557
    %v559 = vrot.slane %v64, %v558
    %v560 = vlaneseq
    %v561 = vshrl.u32 %v560, 7
    %v562 = vsub.s32 6, %v561
    %v563 = vrot.slane %v65, %v562
    %v564 = vmul.f32 %v546, %v551
    %v565 = vmul.f32 %v545, %v555
    %v566 = vmul.f32 %v544, %v559
    %v567 = vmul.f32 %v547, %v563
    %568 = vrot.lane.b32.xlu0 %v364, 112
    %v569 = vpop.permute.xlu0 %568
    %570 = vrot.lane.b32.xlu0 %v365, 112
    %v571 = vpop.permute.xlu0 %570
    %572 = vrot.lane.b32.xlu0 %v366, 112
    %v573 = vpop.permute.xlu0 %572
    %574 = vrot.lane.b32.xlu0 %v367, 112
    %v575 = vpop.permute.xlu0 %574
    %vm576 = vcmp.lt.s32.totalorder %v377, 112
    %v577 = vsel %vm576, %v573, %v575
    %v578 = vsel %vm576, %v571, %v573
    %v579 = vsel %vm576, %v569, %v571
    %v580 = vsel %vm576, %v575, %v569
    %v581 = vlaneseq
    %v582 = vshrl.u32 %v581, 7
    %v583 = vsub.s32 7, %v582
    %v584 = vrot.slane %v62, %v583
    %v585 = vlaneseq
    %v586 = vshrl.u32 %v585, 7
    %v587 = vsub.s32 7, %v586
    %v588 = vrot.slane %v63, %v587
    %v589 = vlaneseq
    %v590 = vshrl.u32 %v589, 7
    %v591 = vsub.s32 7, %v590
    %v592 = vrot.slane %v64, %v591
    %v593 = vlaneseq
    %v594 = vshrl.u32 %v593, 7
    %v595 = vsub.s32 7, %v594
    %v596 = vrot.slane %v65, %v595
    %v597 = vmul.f32 %v579, %v584
    %v598 = vmul.f32 %v578, %v588
    %v599 = vmul.f32 %v577, %v592
    %v600 = vmul.f32 %v580, %v596
    %601 = vrot.lane.b32.xlu0 %v364, 111
    %v602 = vpop.permute.xlu0 %601
    %603 = vrot.lane.b32.xlu0 %v365, 111
    %v604 = vpop.permute.xlu0 %603
    %605 = vrot.lane.b32.xlu0 %v366, 111
    %v606 = vpop.permute.xlu0 %605
    %607 = vrot.lane.b32.xlu0 %v367, 111
    %v608 = vpop.permute.xlu0 %607
    %vm609 = vcmp.lt.s32.totalorder %v377, 111
    %v610 = vsel %vm609, %v606, %v608
    %v611 = vsel %vm609, %v604, %v606
    %v612 = vsel %vm609, %v602, %v604
    %v613 = vsel %vm609, %v608, %v602
    %v614 = vlaneseq
    %v615 = vshrl.u32 %v614, 7
    %v616 = vsub.s32 0, %v615
    %v617 = vrot.slane %v66, %v616
    %v618 = vlaneseq
    %v619 = vshrl.u32 %v618, 7
    %v620 = vsub.s32 0, %v619
    %v621 = vrot.slane %v67, %v620
    %v622 = vlaneseq
    %v623 = vshrl.u32 %v622, 7
    %v624 = vsub.s32 0, %v623
    %v625 = vrot.slane %v68, %v624
    %v626 = vlaneseq
    %v627 = vshrl.u32 %v626, 7
    %v628 = vsub.s32 0, %v627
    %v629 = vrot.slane %v69, %v628
    %v630 = vmul.f32 %v612, %v617
    %v631 = vmul.f32 %v611, %v621
    %v632 = vmul.f32 %v610, %v625
    %v633 = vmul.f32 %v613, %v629
    %v634 = vld [vmem:[%s4] sm:$0xf]
    %v635 = vld [vmem:[%s4 + $0x4] sm:$0xf]
    %v636 = vpack.c.bf16 %v432, %v399
    %v637 = vpack.c.bf16 %v433, %v400
    %v638 = vpack.c.bf16 %v434, %v401
    %v639 = vpack.c.bf16 %v435, %v402
    %v640 = vpack.c.bf16 %v498, %v465
    %v641 = vpack.c.bf16 %v499, %v466
    %v642 = vpack.c.bf16 %v500, %v467
    %v643 = vpack.c.bf16 %v501, %v468
    %v644 = vpack.c.bf16 %v531, %v364
    %v645 = vpack.c.bf16 %v532, %v365
    %v646 = vpack.c.bf16 %v533, %v366
    %v647 = vpack.c.bf16 %v534, %v367
    %v648 = vpack.c.bf16 %v597, %v564
    %v649 = vpack.c.bf16 %v598, %v565
    %v650 = vpack.c.bf16 %v599, %v566
    %v651 = vpack.c.bf16 %v600, %v567
    %v652 = vpack.c.bf16 %v630, %v630
    %v653 = vpack.c.bf16 %v631, %v631
    %v654 = vpack.c.bf16 %v632, %v632
    %v655 = vpack.c.bf16 %v633, %v633
    %v656 = vld [vmem:[%s5] sm:$0xff]
    %v657 = vld [vmem:[%s5 + $0x8] sm:$0xff]
    %659 = vset.pattern.permute.xlu0 0
    %660 = vperm.xlu0 %659, %v656
    %v661 = vpop.permute.xlu0 %660
    %664 = vset.pattern.permute.xlu0 0
    %665 = vperm.xlu0 %664, %v657
    %v666 = vpop.permute.xlu0 %665
    %v670 = vunpack.c.l.b16 %v634
    %v671 = vunpack.c.l.b16 %v635
    %v672 = vpack.c.b16 %v671, %v670
    %vm673 = vcmask 588800
    %v675 = vsel %vm673, %v672, 0
    %v678 = vsel %vm363, %v652, 0
    %v681 = vsel %vm363, %v653, 0
    %v684 = vsel %vm363, %v654, 0
    %v687 = vsel %vm363, %v655, 0
    %689 = vmatprep.subr.bf16.mxu0 %v637
    %690 = vmatpush1.bf16.msra.mxu0 %v636
    %691 = vmatprep.subr.bf16.mxu0 %v641
    %692 = vmatpush1.bf16.msra.mxu0 %v640
    %693 = vmatprep.subr.bf16.mxu0 %v645
    %694 = vmatpush1.bf16.msra.mxu0 %v644
    %695 = vmatprep.subr.bf16.mxu0 %v649
    %696 = vmatpush1.bf16.msra.mxu0 %v648
    %697 = vmatprep.subr.bf16.mxu0 %v681
    %698 = vmatpush1.bf16.msra.mxu0 %v678
    %699 = vmatprep.subr.bf16.mxu0 0
    %700 = vmatpush1.bf16.msra.mxu0 0
    %701 = vmatprep.subr.bf16.mxu0 0
    %702 = vmatpush1.bf16.msra.mxu0 0
    %703 = vmatprep.subr.bf16.mxu0 0
    %704 = vmatpush1.bf16.msra.mxu0 0
    %705 = vmatprep.subr.bf16.mxu0 0
    %706 = vmatpush1.bf16.msra.mxu0 0
    %707 = vmatprep.subr.bf16.mxu0 0
    %708 = vmatpush1.bf16.msra.mxu0 0
    %709 = vmatprep.subr.bf16.mxu0 0
    %710 = vmatpush1.bf16.msra.mxu0 0
    %711 = vmatprep.subr.bf16.mxu0 0
    %712 = vmatpush1.bf16.msra.mxu0 0
    %713 = vmatprep.subr.bf16.mxu0 0
    %714 = vmatpush1.bf16.msra.mxu0 0
    %715 = vmatprep.subr.bf16.mxu0 0
    %716 = vmatpush1.bf16.msra.mxu0 0
    %717 = vmatprep.subr.bf16.mxu0 0
    %718 = vmatpush1.bf16.msra.mxu0 0
    %719 = vmatprep.subr.bf16.mxu0 0
    %720 = vmatpush1.bf16.msra.mxu0 0
    %721 = vmatprep.mubr.bf16.mxu0 0
    %722 = vmatmul.mubr.bf16.gmra.mrb[0].mxu0 %v675
    %v723 = vpop.f32.mrb[0].mxu0
    %v724 = vadd.f32 %v661, %v723
    %v725 = vpop.f32.mrb[0].mxu0
    %v726 = vadd.f32 %v661, %v725
    %v727 = vpop.f32.mrb[0].mxu0
    %v728 = vadd.f32 %v666, %v727
    %v729 = vpop.f32.mrb[0].mxu0
    %v730 = vadd.f32 %v666, %v729
    %731 = vdwg.mxu0
    %732 = vmatprep.subr.bf16.mxu0 %v639
    %733 = vmatpush1.bf16.msra.mxu0 %v638
    %734 = vmatprep.subr.bf16.mxu0 %v643
    %735 = vmatpush1.bf16.msra.mxu0 %v642
    %736 = vmatprep.subr.bf16.mxu0 %v647
    %737 = vmatpush1.bf16.msra.mxu0 %v646
    %738 = vmatprep.subr.bf16.mxu0 %v651
    %739 = vmatpush1.bf16.msra.mxu0 %v650
    %740 = vmatprep.subr.bf16.mxu0 %v687
    %741 = vmatpush1.bf16.msra.mxu0 %v684
    %742 = vmatprep.subr.bf16.mxu0 0
    %743 = vmatpush1.bf16.msra.mxu0 0
    %744 = vmatprep.subr.bf16.mxu0 0
    %745 = vmatpush1.bf16.msra.mxu0 0
    %746 = vmatprep.subr.bf16.mxu0 0
    %747 = vmatpush1.bf16.msra.mxu0 0
    %748 = vmatprep.subr.bf16.mxu0 0
    %749 = vmatpush1.bf16.msra.mxu0 0
    %750 = vmatprep.subr.bf16.mxu0 0
    %751 = vmatpush1.bf16.msra.mxu0 0
    %752 = vmatprep.subr.bf16.mxu0 0
    %753 = vmatpush1.bf16.msra.mxu0 0
    %754 = vmatprep.subr.bf16.mxu0 0
    %755 = vmatpush1.bf16.msra.mxu0 0
    %756 = vmatprep.subr.bf16.mxu0 0
    %757 = vmatpush1.bf16.msra.mxu0 0
    %758 = vmatprep.subr.bf16.mxu0 0
    %759 = vmatpush1.bf16.msra.mxu0 0
    %760 = vmatprep.subr.bf16.mxu0 0
    %761 = vmatpush1.bf16.msra.mxu0 0
    %762 = vmatprep.subr.bf16.mxu0 0
    %763 = vmatpush1.bf16.msra.mxu0 0
    %764 = vmatprep.mubr.bf16.mxu0 0
    %765 = vmatmul.mubr.bf16.gmra.mrb[0].mxu0 %v675
    %v766 = vpop.f32.mrb[0].mxu0
    %v767 = vadd.f32 %v661, %v766
    %v768 = vpop.f32.mrb[0].mxu0
    %v769 = vadd.f32 %v661, %v768
    %v770 = vpop.f32.mrb[0].mxu0
    %v771 = vadd.f32 %v666, %v770
    %v772 = vpop.f32.mrb[0].mxu0
    %v773 = vadd.f32 %v666, %v772
    %774 = vdwg.mxu0
    %v775 = vmax.f32 %v724, 0.0
    %v776 = vmax.f32 %v726, 0.0
    %v777 = vmax.f32 %v767, 0.0
    %v778 = vmax.f32 %v769, 0.0
    %779 = vrot.lane.b32.xlu0 %v775, 17
    %v780 = vpop.permute.xlu0 %779
    %781 = vrot.lane.b32.xlu0 %v776, 17
    %v782 = vpop.permute.xlu0 %781
    %783 = vrot.lane.b32.xlu0 %v777, 17
    %v784 = vpop.permute.xlu0 %783
    %785 = vrot.lane.b32.xlu0 %v778, 17
    %v786 = vpop.permute.xlu0 %785
    %v787 = vsel %vm378, %v784, %v786
    %v788 = vsel %vm378, %v782, %v784
    %v789 = vsel %vm378, %v780, %v782
    %v790 = vsel %vm378, %v786, %v780
    %v791 = vmul.f32 %v790, %v386
    %v792 = vmul.f32 %v789, %v390
    %v793 = vmul.f32 %v788, %v394
    %v794 = vmul.f32 %v787, %v398
    %795 = vrot.lane.b32.xlu0 %v775, 16
    %v796 = vpop.permute.xlu0 %795
    %797 = vrot.lane.b32.xlu0 %v776, 16
    %v798 = vpop.permute.xlu0 %797
    %799 = vrot.lane.b32.xlu0 %v777, 16
    %v800 = vpop.permute.xlu0 %799
    %801 = vrot.lane.b32.xlu0 %v778, 16
    %v802 = vpop.permute.xlu0 %801
    %v803 = vsel %vm411, %v800, %v802
    %v804 = vsel %vm411, %v798, %v800
    %v805 = vsel %vm411, %v796, %v798
    %v806 = vsel %vm411, %v802, %v796
    %v807 = vmul.f32 %v806, %v419
    %v808 = vmul.f32 %v805, %v423
    %v809 = vmul.f32 %v804, %v427
    %v810 = vmul.f32 %v803, %v431
    %811 = vrot.lane.b32.xlu0 %v775, 15
    %v812 = vpop.permute.xlu0 %811
    %813 = vrot.lane.b32.xlu0 %v776, 15
    %v814 = vpop.permute.xlu0 %813
    %815 = vrot.lane.b32.xlu0 %v777, 15
    %v816 = vpop.permute.xlu0 %815
    %817 = vrot.lane.b32.xlu0 %v778, 15
    %v818 = vpop.permute.xlu0 %817
    %v819 = vsel %vm444, %v816, %v818
    %v820 = vsel %vm444, %v814, %v816
    %v821 = vsel %vm444, %v812, %v814
    %v822 = vsel %vm444, %v818, %v812
    %v823 = vmul.f32 %v822, %v452
    %v824 = vmul.f32 %v821, %v456
    %v825 = vmul.f32 %v820, %v460
    %v826 = vmul.f32 %v819, %v464
    %827 = vrot.lane.b32.xlu0 %v775, 1
    %v828 = vpop.permute.xlu0 %827
    %829 = vrot.lane.b32.xlu0 %v776, 1
    %v830 = vpop.permute.xlu0 %829
    %831 = vrot.lane.b32.xlu0 %v777, 1
    %v832 = vpop.permute.xlu0 %831
    %833 = vrot.lane.b32.xlu0 %v778, 1
    %v834 = vpop.permute.xlu0 %833
    %v835 = vsel %vm477, %v832, %v834
    %v836 = vsel %vm477, %v830, %v832
    %v837 = vsel %vm477, %v828, %v830
    %v838 = vsel %vm477, %v834, %v828
    %v839 = vmul.f32 %v838, %v485
    %v840 = vmul.f32 %v837, %v489
    %v841 = vmul.f32 %v836, %v493
    %v842 = vmul.f32 %v835, %v497
    %843 = vrot.lane.b32.xlu0 %v775, 127
    %v844 = vpop.permute.xlu0 %843
    %845 = vrot.lane.b32.xlu0 %v776, 127
    %v846 = vpop.permute.xlu0 %845
    %847 = vrot.lane.b32.xlu0 %v777, 127
    %v848 = vpop.permute.xlu0 %847
    %849 = vrot.lane.b32.xlu0 %v778, 127
    %v850 = vpop.permute.xlu0 %849
    %v851 = vsel %vm510, %v848, %v850
    %v852 = vsel %vm510, %v846, %v848
    %v853 = vsel %vm510, %v844, %v846
    %v854 = vsel %vm510, %v850, %v844
    %v855 = vmul.f32 %v853, %v518
    %v856 = vmul.f32 %v852, %v522
    %v857 = vmul.f32 %v851, %v526
    %v858 = vmul.f32 %v854, %v530
    %859 = vrot.lane.b32.xlu0 %v775, 113
    %v860 = vpop.permute.xlu0 %859
    %861 = vrot.lane.b32.xlu0 %v776, 113
    %v862 = vpop.permute.xlu0 %861
    %863 = vrot.lane.b32.xlu0 %v777, 113
    %v864 = vpop.permute.xlu0 %863
    %865 = vrot.lane.b32.xlu0 %v778, 113
    %v866 = vpop.permute.xlu0 %865
    %v867 = vsel %vm543, %v864, %v866
    %v868 = vsel %vm543, %v862, %v864
    %v869 = vsel %vm543, %v860, %v862
    %v870 = vsel %vm543, %v866, %v860
    %v871 = vmul.f32 %v869, %v551
    %v872 = vmul.f32 %v868, %v555
    %v873 = vmul.f32 %v867, %v559
    %v874 = vmul.f32 %v870, %v563
    %875 = vrot.lane.b32.xlu0 %v775, 112
    %v876 = vpop.permute.xlu0 %875
    %877 = vrot.lane.b32.xlu0 %v776, 112
    %v878 = vpop.permute.xlu0 %877
    %879 = vrot.lane.b32.xlu0 %v777, 112
    %v880 = vpop.permute.xlu0 %879
    %881 = vrot.lane.b32.xlu0 %v778, 112
    %v882 = vpop.permute.xlu0 %881
    %v883 = vsel %vm576, %v880, %v882
    %v884 = vsel %vm576, %v878, %v880
    %v885 = vsel %vm576, %v876, %v878
    %v886 = vsel %vm576, %v882, %v876
    %v887 = vmul.f32 %v885, %v584
    %v888 = vmul.f32 %v884, %v588
    %v889 = vmul.f32 %v883, %v592
    %v890 = vmul.f32 %v886, %v596
    %891 = vrot.lane.b32.xlu0 %v775, 111
    %v892 = vpop.permute.xlu0 %891
    %893 = vrot.lane.b32.xlu0 %v776, 111
    %v894 = vpop.permute.xlu0 %893
    %895 = vrot.lane.b32.xlu0 %v777, 111
    %v896 = vpop.permute.xlu0 %895
    %897 = vrot.lane.b32.xlu0 %v778, 111
    %v898 = vpop.permute.xlu0 %897
    %v899 = vsel %vm609, %v896, %v898
    %v900 = vsel %vm609, %v894, %v896
    %v901 = vsel %vm609, %v892, %v894
    %v902 = vsel %vm609, %v898, %v892
    %v903 = vmul.f32 %v901, %v617
    %v904 = vmul.f32 %v900, %v621
    %v905 = vmul.f32 %v899, %v625
    %v906 = vmul.f32 %v902, %v629
    %v907 = vld [vmem:[%s6] sm:$0xf]
    %v908 = vpack.c.bf16 %v807, %v791
    %v909 = vpack.c.bf16 %v808, %v792
    %v910 = vpack.c.bf16 %v809, %v793
    %v911 = vpack.c.bf16 %v810, %v794
    %v912 = vpack.c.bf16 %v839, %v823
    %v913 = vpack.c.bf16 %v840, %v824
    %v914 = vpack.c.bf16 %v841, %v825
    %v915 = vpack.c.bf16 %v842, %v826
    %v916 = vpack.c.bf16 %v855, %v775
    %v917 = vpack.c.bf16 %v856, %v776
    %v918 = vpack.c.bf16 %v857, %v777
    %v919 = vpack.c.bf16 %v858, %v778
    %v920 = vpack.c.bf16 %v887, %v871
    %v921 = vpack.c.bf16 %v888, %v872
    %v922 = vpack.c.bf16 %v889, %v873
    %v923 = vpack.c.bf16 %v890, %v874
    %v924 = vpack.c.bf16 %v903, %v903
    %v925 = vpack.c.bf16 %v904, %v904
    %v926 = vpack.c.bf16 %v905, %v905
    %v927 = vpack.c.bf16 %v906, %v906
    %v928 = vld [vmem:[%s7] sm:$0xff]
    %930 = vset.pattern.permute.xlu0 0
    %931 = vperm.xlu0 %930, %v928
    %v932 = vpop.permute.xlu0 %931
    %v935 = vsel %vm673, %v907, 0
    %v938 = vsel %vm363, %v924, 0
    %v941 = vsel %vm363, %v925, 0
    %v944 = vsel %vm363, %v926, 0
    %v947 = vsel %vm363, %v927, 0
    %949 = vmatprep.subr.bf16.mxu0 %v909
    %950 = vmatpush1.bf16.msra.mxu0 %v908
    %951 = vmatprep.subr.bf16.mxu0 %v913
    %952 = vmatpush1.bf16.msra.mxu0 %v912
    %953 = vmatprep.subr.bf16.mxu0 %v917
    %954 = vmatpush1.bf16.msra.mxu0 %v916
    %955 = vmatprep.subr.bf16.mxu0 %v921
    %956 = vmatpush1.bf16.msra.mxu0 %v920
    %957 = vmatprep.subr.bf16.mxu0 %v941
    %958 = vmatpush1.bf16.msra.mxu0 %v938
    %959 = vmatprep.subr.bf16.mxu0 0
    %960 = vmatpush1.bf16.msra.mxu0 0
    %961 = vmatprep.subr.bf16.mxu0 0
    %962 = vmatpush1.bf16.msra.mxu0 0
    %963 = vmatprep.subr.bf16.mxu0 0
    %964 = vmatpush1.bf16.msra.mxu0 0
    %965 = vmatprep.subr.bf16.mxu0 0
    %966 = vmatpush1.bf16.msra.mxu0 0
    %967 = vmatprep.subr.bf16.mxu0 0
    %968 = vmatpush1.bf16.msra.mxu0 0
    %969 = vmatprep.subr.bf16.mxu0 0
    %970 = vmatpush1.bf16.msra.mxu0 0
    %971 = vmatprep.subr.bf16.mxu0 0
    %972 = vmatpush1.bf16.msra.mxu0 0
    %973 = vmatprep.subr.bf16.mxu0 0
    %974 = vmatpush1.bf16.msra.mxu0 0
    %975 = vmatprep.subr.bf16.mxu0 0
    %976 = vmatpush1.bf16.msra.mxu0 0
    %977 = vmatprep.subr.bf16.mxu0 0
    %978 = vmatpush1.bf16.msra.mxu0 0
    %979 = vmatprep.subr.bf16.mxu0 0
    %980 = vmatpush1.bf16.msra.mxu0 0
    %981 = vmatprep.mubr.bf16.mxu0 0
    %982 = vmatmul.mubr.bf16.gmra.mrb[0].mxu0 %v935
    %v983 = vpop.f32.mrb[0].mxu0
    %v984 = vadd.f32 %v932, %v983
    %v985 = vpop.f32.mrb[0].mxu0
    %v986 = vadd.f32 %v932, %v985
    %v987 = vpop.f32.mrb[0].mxu0
    %v988 = vpop.f32.mrb[0].mxu0
    %989 = vdwg.mxu0
    %990 = vmatprep.subr.bf16.mxu0 %v911
    %991 = vmatpush1.bf16.msra.mxu0 %v910
    %992 = vmatprep.subr.bf16.mxu0 %v915
    %993 = vmatpush1.bf16.msra.mxu0 %v914
    %994 = vmatprep.subr.bf16.mxu0 %v919
    %995 = vmatpush1.bf16.msra.mxu0 %v918
    %996 = vmatprep.subr.bf16.mxu0 %v923
    %997 = vmatpush1.bf16.msra.mxu0 %v922
    %998 = vmatprep.subr.bf16.mxu0 %v947
    %999 = vmatpush1.bf16.msra.mxu0 %v944
    %1000 = vmatprep.subr.bf16.mxu0 0
    %1001 = vmatpush1.bf16.msra.mxu0 0
    %1002 = vmatprep.subr.bf16.mxu0 0
    %1003 = vmatpush1.bf16.msra.mxu0 0
    %1004 = vmatprep.subr.bf16.mxu0 0
    %1005 = vmatpush1.bf16.msra.mxu0 0
    %1006 = vmatprep.subr.bf16.mxu0 0
    %1007 = vmatpush1.bf16.msra.mxu0 0
    %1008 = vmatprep.subr.bf16.mxu0 0
    %1009 = vmatpush1.bf16.msra.mxu0 0
    %1010 = vmatprep.subr.bf16.mxu0 0
    %1011 = vmatpush1.bf16.msra.mxu0 0
    %1012 = vmatprep.subr.bf16.mxu0 0
    %1013 = vmatpush1.bf16.msra.mxu0 0
    %1014 = vmatprep.subr.bf16.mxu0 0
    %1015 = vmatpush1.bf16.msra.mxu0 0
    %1016 = vmatprep.subr.bf16.mxu0 0
    %1017 = vmatpush1.bf16.msra.mxu0 0
    %1018 = vmatprep.subr.bf16.mxu0 0
    %1019 = vmatpush1.bf16.msra.mxu0 0
    %1020 = vmatprep.subr.bf16.mxu0 0
    %1021 = vmatpush1.bf16.msra.mxu0 0
    %1022 = vmatprep.mubr.bf16.mxu0 0
    %1023 = vmatmul.mubr.bf16.gmra.mrb[0].mxu0 %v935
    %v1024 = vpop.f32.mrb[0].mxu0
    %v1025 = vadd.f32 %v932, %v1024
    %v1026 = vpop.f32.mrb[0].mxu0
    %v1027 = vadd.f32 %v932, %v1026
    %v1028 = vpop.f32.mrb[0].mxu0
    %v1029 = vpop.f32.mrb[0].mxu0
    %1030 = vdwg.mxu0
    %v1031 = vadd.f32 %v984, %v728
    %v1032 = vadd.f32 %v986, %v730
    %v1033 = vadd.f32 %v1025, %v771
    %v1034 = vadd.f32 %v1027, %v773
    %v1035 = vmax.f32 %v1031, 0.0
    %v1036 = vmax.f32 %v1032, 0.0
    %v1037 = vmax.f32 %v1033, 0.0
    %v1038 = vmax.f32 %v1034, 0.0
    %1039 = vst [vmem:[#allocation7] sm:$0xff] %v1035
    %1040 = vst [vmem:[#allocation7 + $0x8] sm:$0xff] %v1036
    %1041 = vst [vmem:[#allocation7 + $0x10] sm:$0xff] %v1037
    %1042 = vst [vmem:[#allocation7 + $0x18] sm:$0xff] %v1038
    // Predicated region
    $region42: #{tpu_custom_call.1} parent=1 // pred_check
      _
    $region43: #{tpu_custom_call.1} parent=1 // pred_check_branch
      %1044 = sbr.rel (0) target = $region45
    $region44: #{tpu_custom_call.1} parent=1 // pred_region
      %s1046 = ssub.s32 512, 512
      %1047 = vsyncadd [#allocation4], %s1046
      %s1049 = sshll.u32 [#allocation7], 4
      %s1050 = int_to_ptr.vmem [resolvable:$true] %s1049
      %1052 = dma.vmem_to_hbm [thread:$0]  %s1050, 512, %s8, [#allocation4]
    $region45: #{tpu_custom_call.1} parent=1 // pred_fallthru
      _
    // Predicated region
    $region46: #{tpu_custom_call.1} parent=1 // pred_check
      _
    $region47: #{tpu_custom_call.1} parent=1 // pred_check_branch
      %1054 = sbr.rel (0) target = $region49
    $region48: #{tpu_custom_call.1} parent=1 // pred_region
      %1055 = dma.done [#allocation4], 512
    $region49: #{tpu_custom_call.1} parent=1 // pred_fallthru
      _
    %1056 = vsyncpa [#allocation3], 1
    %1057 = vsyncpa [#allocation6], 1
    %1058 = vsyncpa [#allocation4], 1

</llo_original>
